<compile_context>
chip_gen: v7x
topology: tpu7x:2x2x1
jax: 0.10.0
libtpu: 0.0.40
codegen_flags: <defaults>
</compile_context>

<pallas_src>
import functools

import jax
import jax.numpy as jnp
from jax import lax
from jax.experimental import pallas as pl
from jax.experimental.pallas import tpu as pltpu


def _round_down(a, b):
    return (a // b) * b


def _vmem_capacity_bytes():
    try:
        return int(pltpu.get_tpu_info().vmem_capacity_bytes)
    except Exception:
        return 64 << 20  # conservative (v7x-sized) fallback


def _min_sublane(dtype):
    # second-minor tile granularity: 8 rows (f32), 16 (bf16), 32 (int8/fp8)
    return 8 * max(1, 4 // jnp.dtype(dtype).itemsize)


# --------------------------------------------------------------------------- #
# Full-vocab logits:  (M, K) @ (N, K)^T + (N,)
# --------------------------------------------------------------------------- #
def _fullvocab_kernel(x_ref, w_ref, b_ref, o_ref):
    """One (tm, tn) output tile; full-K contraction in a single MXU pass.

    x_ref: (tm, K)   activations
    w_ref: (tn, K)   weight rows in native nn.Linear (vocab, d_model) layout
    b_ref: (1,  tn)  bias slice
    """
    # NT contraction on the shared last (d_model) axis -- same form as
    # flash-attention's q @ k^T; the MXU consumes it without an XLU transpose.
    acc = lax.dot_general(
        x_ref[...], w_ref[...],
        dimension_numbers=(((1,), (1,)), ((), ())),
        preferred_element_type=jnp.float32)
    o_ref[...] = (acc + b_ref[...].astype(jnp.float32)).astype(o_ref.dtype)


def _fullvocab_kernel_ksplit(x_ref, w_ref, b_ref, o_ref, acc_ref):
    """Same as above but with a K grid axis (innermost, 'arbitrary') and an
    f32 VMEM accumulator, used when d_model is too large for a single pass."""
    @pl.when(pl.program_id(2) == 0)
    def _init():
        acc_ref[...] = jnp.zeros_like(acc_ref)

    acc_ref[...] += lax.dot_general(
        x_ref[...], w_ref[...],
        dimension_numbers=(((1,), (1,)), ((), ())),
        preferred_element_type=jnp.float32)

    @pl.when(pl.program_id(2) == pl.num_programs(2) - 1)
    def _finalize():
        o_ref[...] = (acc_ref[...] + b_ref[...].astype(jnp.float32)).astype(o_ref.dtype)


@functools.partial(jax.jit, static_argnames=("tiles",))
def _full_vocab_logits(x, weight, bias, tiles=None):
    M, K = x.shape
    N, K2 = weight.shape
    assert K == K2 and bias.shape == (N,)

    xi = jnp.dtype(x.dtype).itemsize
    wi = jnp.dtype(weight.dtype).itemsize
    out_dtype = jnp.result_type(x.dtype, weight.dtype)
    oi = jnp.dtype(out_dtype).itemsize

    # ---- generation- and dtype-aware budgets --------------------------------
    big_vmem = _vmem_capacity_bytes() >= (100 << 20)      # v5e/v6e: 128 MiB
    w_budget = (12 << 20) if big_vmem else (4 << 20)      # per-buffer weight tile
    x_budget = (16 << 20) if big_vmem else (8 << 20)      # per-buffer x tile
    vmem_cap = (96 << 20) if big_vmem else (48 << 20)
    tn_max = 4096 if big_vmem else 2048

    if tiles is not None:
        tm, tn, tk = tiles                                # test / tuning override
        if tk is not None:
            assert K % tk == 0
    else:
        # K split only when a full-K weight tile would squeeze tn below 512.
        tk = None
        if _round_down(w_budget // (K * wi), 256) < 512:
            for cand_tk in (1024, 896, 768, 640, 512, 384, 256, 128):
                if K % cand_tk == 0:
                    tk = cand_tk
                    break
        k_tile = tk if tk is not None else K

        # vocab (lane) tile: 256-aligned (v7x MXU shape), capped by budget.
        tn = _round_down(w_budget // (k_tile * wi), 256)
        tn = max(128, min(tn_max, tn))
        if tn >= N:
            tn = N                                        # single full-dim tile

        # batch tile, rounded to the dtype's sublane packing.
        ms = _min_sublane(x.dtype)
        tm = _round_down(x_budget // (k_tile * xi), ms)
        tm = max(ms, min(256, tm))
        if tm >= M:
            tm = M

    k_tile = tk if tk is not None else K
    ni = pl.cdiv(M, tm)
    nj = pl.cdiv(N, tn)

    bias2d = bias.reshape(1, N)

    # Double-buffered inputs/outputs + accumulator + slack.
    vmem_bytes = 2 * (tm * k_tile * xi + tn * k_tile * wi
                      + tn * jnp.dtype(bias.dtype).itemsize + tm * tn * oi)
    vmem_bytes += tm * tn * 4 + (2 << 20)
    vmem_limit = int(min(vmem_cap, max(16 << 20, vmem_bytes)))

    # Grid order: vocab tiles outermost, batch tiles innermost -> the (large)
    # weight tile is revisited (not re-DMA'd) across batch tiles; only the
    # small activation tile is re-streamed per vocab tile.
    if tk is None:
        grid = (nj, ni)
        in_specs = [
            pl.BlockSpec((tm, K), lambda j, i: (i, 0)),     # x tile (full K)
            pl.BlockSpec((tn, K), lambda j, i: (j, 0)),     # weight tile, native layout
            pl.BlockSpec((1, tn), lambda j, i: (0, j)),     # bias tile
        ]
        out_specs = pl.BlockSpec((tm, tn), lambda j, i: (i, j))
        scratch = []
        kernel = _fullvocab_kernel
        dims = ("parallel", "parallel")
    else:
        grid = (nj, ni, K // tk)
        in_specs = [
            pl.BlockSpec((tm, tk), lambda j, i, k: (i, k)),
            pl.BlockSpec((tn, tk), lambda j, i, k: (j, k)),
            pl.BlockSpec((1, tn), lambda j, i, k: (0, j)),
        ]
        out_specs = pl.BlockSpec((tm, tn), lambda j, i, k: (i, j))
        scratch = [pltpu.VMEM((tm, tn), jnp.float32)]
        kernel = _fullvocab_kernel_ksplit
        dims = ("parallel", "parallel", "arbitrary")

    return pl.pallas_call(
        kernel,
        out_shape=jax.ShapeDtypeStruct((M, N), out_dtype),
        grid_spec=pltpu.PrefetchScalarGridSpec(
            num_scalar_prefetch=0,
            grid=grid,
            in_specs=in_specs,
            out_specs=out_specs,
            scratch_shapes=scratch,
        ),
        compiler_params=pltpu.CompilerParams(
            dimension_semantics=dims,
            vmem_limit_bytes=vmem_limit,
        ),
    )(x, weight, bias2d)


# --------------------------------------------------------------------------- #
# Candidate logits:  out[m, c] = x[m] . W[candidates[m, c]] + b[candidates[m, c]]
# --------------------------------------------------------------------------- #
def _candidate_kernel(x_ref, wc_ref, bc_ref, o_ref):
    """Per-row candidate logits for one row tile.

    x_ref:  (tm, K)      activations
    wc_ref: (tm, C, K)   gathered weight rows
    bc_ref: (tm, C)      gathered bias
    """
    xq = x_ref[...][:, None, :]                            # (tm, 1, K)
    # Batched MXU contraction (batch = row, contract = d_model), same shape
    # pattern as a q-length-1 attention score matmul.
    acc = lax.dot_general(
        xq, wc_ref[...],
        dimension_numbers=(((2,), (2,)), ((0,), (0,))),
        preferred_element_type=jnp.float32)                # (tm, 1, C)
    o_ref[...] = (acc[:, 0, :] + bc_ref[...].astype(jnp.float32)).astype(o_ref.dtype)


@jax.jit
def _candidate_logits(x, weight, bias, candidates):
    M, K = x.shape
    Mc, C = candidates.shape
    assert Mc == M

    out_dtype = jnp.result_type(x.dtype, weight.dtype)
    xi = jnp.dtype(x.dtype).itemsize
    wi = jnp.dtype(weight.dtype).itemsize
    oi = jnp.dtype(out_dtype).itemsize

    # TODO(synk): fuse this vocab-row gather into the kernel (scalar-prefetched
    # candidate ids driving per-row DMA from HBM) to avoid the extra HBM pass
    # over the gathered (M, C, K) rows.
    w_cand = weight[candidates]                            # (M, C, K)
    b_cand = bias[candidates]                              # (M, C)

    big_vmem = _vmem_capacity_bytes() >= (100 << 20)
    budget = (16 << 20) if big_vmem else (8 << 20)
    ms = _min_sublane(x.dtype)
    tm = _round_down(budget // max(1, C * K * wi), ms)
    tm = max(ms, min(256, tm))
    if tm >= M:
        tm = M

    vmem_bytes = 2 * (tm * K * xi + tm * C * K * wi
                      + tm * C * jnp.dtype(bias.dtype).itemsize
                      + tm * C * oi) + (2 << 20)
    vmem_limit = int(min((96 << 20) if big_vmem else (48 << 20),
                         max(16 << 20, vmem_bytes)))

    return pl.pallas_call(
        _candidate_kernel,
        out_shape=jax.ShapeDtypeStruct((M, C), out_dtype),
        grid_spec=pltpu.PrefetchScalarGridSpec(
            num_scalar_prefetch=0,
            grid=(pl.cdiv(M, tm),),
            in_specs=[
                pl.BlockSpec((tm, K), lambda i: (i, 0)),
                pl.BlockSpec((tm, C, K), lambda i: (i, 0, 0)),
                pl.BlockSpec((tm, C), lambda i: (i, 0)),
            ],
            out_specs=pl.BlockSpec((tm, C), lambda i: (i, 0)),
        ),
        compiler_params=pltpu.CompilerParams(
            dimension_semantics=("parallel",),
            vmem_limit_bytes=vmem_limit,
        ),
    )(x, w_cand, b_cand)


# --------------------------------------------------------------------------- #
# Public forward (matches LinearPredictionHead.forward)
# --------------------------------------------------------------------------- #
def linear_prediction_head(x, weight, bias, candidates=None):
    """x: (batch, d_model); weight: (vocab, d_model); bias: (vocab,);
    candidates: optional (batch, n_cand) int indices into the vocab dim."""
    if candidates is None:
        return _full_vocab_logits(x, weight, bias)
    return _candidate_logits(x, weight, bias, candidates)


if __name__ == "__main__":
    key = jax.random.PRNGKey(0)
    k_x, k_w, k_b, k_c = jax.random.split(key, 4)

    batch, d_model, num_items, n_cand = 8, 128, 511, 16
    vocab = num_items + 1  # 512

    x = jax.random.normal(k_x, (batch, d_model), dtype=jnp.float32)
    weight = jax.random.normal(k_w, (vocab, d_model), dtype=jnp.float32) * 0.02
    bias = jax.random.normal(k_b, (vocab,), dtype=jnp.float32) * 0.01
    candidates = jax.random.randint(k_c, (batch, n_cand), 0, vocab, dtype=jnp.int32)

    ref = x @ weight.T + bias
    ref_cand = jnp.take_along_axis(ref, candidates, axis=1)

    # Full-vocab logits (auto tiling, single-pass K)
    logits = jax.block_until_ready(linear_prediction_head(x, weight, bias))
    assert logits.shape == ref.shape
    assert jnp.allclose(logits, ref, atol=1e-4, rtol=1e-4)

    # Candidate logits (tiled over rows, never computes the full vocab)
    cand_logits = jax.block_until_ready(
        linear_prediction_head(x, weight, bias, candidates))
    assert cand_logits.shape == ref_cand.shape
    assert jnp.allclose(cand_logits, ref_cand, atol=1e-3, rtol=1e-3)

    # bf16 inputs -> bf16 logits with f32 accumulation (dtype-aware path)
    xb, wb = x.astype(jnp.bfloat16), weight.astype(jnp.bfloat16)
    ref_bf = xb.astype(jnp.float32) @ wb.astype(jnp.float32).T + bias
    logits_bf = jax.block_until_ready(linear_prediction_head(xb, wb, bias))
    assert logits_bf.dtype == jnp.bfloat16
    assert jnp.allclose(logits_bf.astype(jnp.float32), ref_bf, atol=5e-2, rtol=5e-2)

    # Ragged vocab / batch tiles (no padding anywhere) + forced small tiles
    b2, d2, v2 = 20, 256, 300
    x2 = jax.random.normal(k_x, (b2, d2), dtype=jnp.float32)
    w2 = jax.random.normal(k_w, (v2, d2), dtype=jnp.float32) * 0.05
    bias2 = jax.random.normal(k_b, (v2,), dtype=jnp.float32) * 0.01
    ref2 = x2 @ w2.T + bias2
    out2 = jax.block_until_ready(_full_vocab_logits(x2, w2, bias2, tiles=(8, 128, None)))
    assert jnp.allclose(out2, ref2, atol=1e-4, rtol=1e-4)

    # K-split accumulator path (forced tk=128 over K=256)
    out3 = jax.block_until_ready(_full_vocab_logits(x2, w2, bias2, tiles=(8, 128, 128)))
    assert jnp.allclose(out3, ref2, atol=1e-4, rtol=1e-4)

    print("KERNEL_OK")
</pallas_src>

<mosaic_0001>
module attributes {stable_mosaic.version = 11 : i64} {
  func.func @_fullvocab_kernel(%arg0: i32, %arg1: i32, %arg2: memref<8x128xf32, #tpu.memory_space<vmem>>, %arg3: memref<512x128xf32, #tpu.memory_space<vmem>>, %arg4: memref<1x512xf32, #tpu.memory_space<vmem>>, %arg5: memref<8x512xf32, #tpu.memory_space<vmem>>) attributes {dimension_semantics = [#tpu.dimension_semantics<parallel>, #tpu.dimension_semantics<parallel>], iteration_bounds = array<i64: 1, 1>, scalar_prefetch = 0 : i64, scratch_operands = 0 : i64, tpu.core_type = #tpu.core_type<tc>, window_params = [{transform_indices = @transform_0, window_bounds = array<i64: 8, 128>}, {transform_indices = @transform_1, window_bounds = array<i64: 512, 128>}, {transform_indices = @transform_2, window_bounds = array<i64: 1, 512>}, {transform_indices = @transform_3, window_bounds = array<i64: 8, 512>}]} {
    %c0 = arith.constant 0 : index
    %c0_0 = arith.constant 0 : index
    %0 = vector.load %arg2[%c0, %c0_0] : memref<8x128xf32, #tpu.memory_space<vmem>>, vector<8x128xf32>
    %c0_1 = arith.constant 0 : index
    %c0_2 = arith.constant 0 : index
    %1 = vector.load %arg3[%c0_1, %c0_2] : memref<512x128xf32, #tpu.memory_space<vmem>>, vector<512x128xf32>
    %cst = arith.constant dense<0.000000e+00> : vector<8x512xf32>
    %2 = tpu.matmul %0, %1, %cst {dimension_numbers = #tpu.dot_dimension_numbers<[1], [1], [0], [0], [0, 0, 1, 0], [], []>} : vector<8x128xf32>, vector<512x128xf32>, vector<8x512xf32> -> vector<8x512xf32>
    %c0_3 = arith.constant 0 : index
    %c0_4 = arith.constant 0 : index
    %3 = vector.load %arg4[%c0_3, %c0_4] : memref<1x512xf32, #tpu.memory_space<vmem>>, vector<1x512xf32>
    %4 = vector.broadcast %3 : vector<1x512xf32> to vector<8x512xf32>
    %5 = arith.addf %2, %4 : vector<8x512xf32>
    %c0_5 = arith.constant 0 : index
    %c0_6 = arith.constant 0 : index
    %6 = vector.load %arg5[%c0_5, %c0_6] : memref<8x512xf32, #tpu.memory_space<vmem>>, vector<8x512xf32>
    tpu.vector_store %arg5[%c0_5, %c0_6], %5 {strides = array<i32>} : memref<8x512xf32, #tpu.memory_space<vmem>>, vector<8x512xf32>,
    return
  }
  func.func @transform_0(%arg0: i32, %arg1: i32) -> (i32, i32) {
    %c0_i32 = arith.constant 0 : i32
    %c0_i32_0 = arith.constant 0 : i32
    return %arg1, %c0_i32 : i32, i32
  }
  func.func @transform_1(%arg0: i32, %arg1: i32) -> (i32, i32) {
    %c0_i32 = arith.constant 0 : i32
    %c0_i32_0 = arith.constant 0 : i32
    return %arg0, %c0_i32 : i32, i32
  }
  func.func @transform_2(%arg0: i32, %arg1: i32) -> (i32, i32) {
    %c0_i32 = arith.constant 0 : i32
    %c0_i32_0 = arith.constant 0 : i32
    return %c0_i32, %arg0 : i32, i32
  }
  func.func @transform_3(%arg0: i32, %arg1: i32) -> (i32, i32) {
    %c0_i32 = arith.constant 0 : i32
    return %arg1, %arg0 : i32, i32
  }
}

</mosaic_0001>

<llo_original>
// kernel: _full_vocab_logits.1
$region0: #{_full_vocab_logits.1}
  #allocation0 [shape = 'u32[]', space=smem, size = 0x4, offset = 0x4, fixed_abs, tag = 'smem constant byte address 0x4 - core index']
  #allocation1 [shape = 'u32[144,128]{1,0:T(1,128)}', space=vmem, size = 0x12000, scoped, tag = 'internal scratch']
  %s0 = inlined_call_operand.hbm [shape: f32[8,128], index: 0, kind: input, shape index: {}]
  %s1 = inlined_call_operand.hbm [shape: f32[512,128], index: 1, kind: input, shape index: {}]
  %s2 = inlined_call_operand.vmem [shape: f32[1,512], index: 2, kind: input, shape index: {}]
  %s3 = inlined_call_operand.hbm [shape: f32[8,512], index: 3, kind: output, shape index: {}]
  %s4 = sld [smem:[#allocation0]]
  $region30: #{_full_vocab_logits.1} parent=0
    _
  %s6 = ssub.s32 1, %s4
  %s7 = scalar_select 0, %s6, %s4
  $region1: #{_full_vocab_logits.1} parent=0
    #allocation2 [shape = 'u8[4096]{0}', space=vmem, size = 0x1000, scoped, tag = 'input window, operand 0, single buffered']
    #allocation3 [shape = 's32[1]{0}', space=sflag, size = 0x4, scoped, tag = 'scoped memory for _full_vocab_logits.1']
    #allocation4 [shape = 's32[1]{0}', space=sflag, size = 0x4, scoped, tag = 'scoped memory for _full_vocab_logits.1']
    #allocation5 [shape = 'u8[262144]{0}', space=vmem, size = 0x40000, scoped, tag = 'input window, operand 1, single buffered']
    #allocation6 [shape = 's32[1]{0}', space=sflag, size = 0x4, scoped, tag = 'scoped memory for _full_vocab_logits.1']
    #allocation7 [shape = 'u8[16384]{0}', space=vmem, size = 0x4000, scoped, tag = 'output window, operand 0, single buffered']
    %8 = vsyncpa [#allocation3], 0
    %9 = vsyncpa [#allocation6], 0
    %10 = vsyncpa [#allocation4], 0
    // Predicated region
    $region2: #{_full_vocab_logits.1} parent=1 // pred_check
      _
    $region3: #{_full_vocab_logits.1} parent=1 // pred_check_branch
      %12 = sbr.rel (0) target = $region5
    $region4: #{_full_vocab_logits.1} parent=1 // pred_region
      %s14 = ssub.s32 128, 128
      %15 = vsyncadd [#allocation3], %s14
      %s17 = sshll.u32 [#allocation2], 4
      %s18 = int_to_ptr.vmem [resolvable:$true] %s17
      %20 = dma.hbm_to_vmem [thread:$0]  %s0, 128, %s18, [#allocation3]
    $region5: #{_full_vocab_logits.1} parent=1 // pred_fallthru
      _
    // Predicated region
    $region6: #{_full_vocab_logits.1} parent=1 // pred_check
      _
    $region7: #{_full_vocab_logits.1} parent=1 // pred_check_branch
      %22 = sbr.rel (0) target = $region9
    $region8: #{_full_vocab_logits.1} parent=1 // pred_region
      %s24 = ssub.s32 8192, 8192
      %25 = vsyncadd [#allocation6], %s24
      %s26 = sshll.u32 [#allocation5], 4
      %s27 = int_to_ptr.vmem [resolvable:$true] %s26
      %32 = dma.hbm_to_vmem [thread:$0]  %s1, 8192, %s27, [#allocation6], 128, 128, 8
    $region9: #{_full_vocab_logits.1} parent=1 // pred_fallthru
      _
    // Predicated region
    $region10: #{_full_vocab_logits.1} parent=1 // pred_check
      _
    $region11: #{_full_vocab_logits.1} parent=1 // pred_check_branch
      %34 = sbr.rel (0) target = $region13
    $region12: #{_full_vocab_logits.1} parent=1 // pred_region
      _
    $region13: #{_full_vocab_logits.1} parent=1 // pred_fallthru
      _
    // Predicated region
    $region14: #{_full_vocab_logits.1} parent=1 // pred_check
      _
    $region15: #{_full_vocab_logits.1} parent=1 // pred_check_branch
      %36 = sbr.rel (0) target = $region17
    $region16: #{_full_vocab_logits.1} parent=1 // pred_region
      %37 = dma.done [#allocation3], 128
    $region17: #{_full_vocab_logits.1} parent=1 // pred_fallthru
      _
    // Predicated region
    $region18: #{_full_vocab_logits.1} parent=1 // pred_check
      _
    $region19: #{_full_vocab_logits.1} parent=1 // pred_check_branch
      %39 = sbr.rel (0) target = $region21
    $region20: #{_full_vocab_logits.1} parent=1 // pred_region
      %40 = dma.done [#allocation6], 8192
    $region21: #{_full_vocab_logits.1} parent=1 // pred_fallthru
      _
    %v41 = vld [vmem:[#allocation2] sm:$0xff]
    %v42 = vld [vmem:[#allocation5] sm:$0xff]
    %v43 = vld [vmem:[#allocation5 + $0x8] sm:$0xff]
    %v44 = vld [vmem:[#allocation5 + $0x10] sm:$0xff]
    %v45 = vld [vmem:[#allocation5 + $0x18] sm:$0xff]
    %v46 = vld [vmem:[#allocation5 + $0x20] sm:$0xff]
    %v47 = vld [vmem:[#allocation5 + $0x28] sm:$0xff]
    %v48 = vld [vmem:[#allocation5 + $0x30] sm:$0xff]
    %v49 = vld [vmem:[#allocation5 + $0x38] sm:$0xff]
    %v50 = vld [vmem:[#allocation5 + $0x40] sm:$0xff]
    %v51 = vld [vmem:[#allocation5 + $0x48] sm:$0xff]
    %v52 = vld [vmem:[#allocation5 + $0x50] sm:$0xff]
    %v53 = vld [vmem:[#allocation5 + $0x58] sm:$0xff]
    %v54 = vld [vmem:[#allocation5 + $0x60] sm:$0xff]
    %v55 = vld [vmem:[#allocation5 + $0x68] sm:$0xff]
    %v56 = vld [vmem:[#allocation5 + $0x70] sm:$0xff]
    %v57 = vld [vmem:[#allocation5 + $0x78] sm:$0xff]
    %v58 = vld [vmem:[#allocation5 + $0x80] sm:$0xff]
    %v59 = vld [vmem:[#allocation5 + $0x88] sm:$0xff]
    %v60 = vld [vmem:[#allocation5 + $0x90] sm:$0xff]
    %v61 = vld [vmem:[#allocation5 + $0x98] sm:$0xff]
    %v62 = vld [vmem:[#allocation5 + $0xa0] sm:$0xff]
    %v63 = vld [vmem:[#allocation5 + $0xa8] sm:$0xff]
    %v64 = vld [vmem:[#allocation5 + $0xb0] sm:$0xff]
    %v65 = vld [vmem:[#allocation5 + $0xb8] sm:$0xff]
    %v66 = vld [vmem:[#allocation5 + $0xc0] sm:$0xff]
    %v67 = vld [vmem:[#allocation5 + $0xc8] sm:$0xff]
    %v68 = vld [vmem:[#allocation5 + $0xd0] sm:$0xff]
    %v69 = vld [vmem:[#allocation5 + $0xd8] sm:$0xff]
    %v70 = vld [vmem:[#allocation5 + $0xe0] sm:$0xff]
    %v71 = vld [vmem:[#allocation5 + $0xe8] sm:$0xff]
    %v72 = vld [vmem:[#allocation5 + $0xf0] sm:$0xff]
    %v73 = vld [vmem:[#allocation5 + $0xf8] sm:$0xff]
    %v74 = vld [vmem:[#allocation5 + $0x100] sm:$0xff]
    %v75 = vld [vmem:[#allocation5 + $0x108] sm:$0xff]
    %v76 = vld [vmem:[#allocation5 + $0x110] sm:$0xff]
    %v77 = vld [vmem:[#allocation5 + $0x118] sm:$0xff]
    %v78 = vld [vmem:[#allocation5 + $0x120] sm:$0xff]
    %v79 = vld [vmem:[#allocation5 + $0x128] sm:$0xff]
    %v80 = vld [vmem:[#allocation5 + $0x130] sm:$0xff]
    %v81 = vld [vmem:[#allocation5 + $0x138] sm:$0xff]
    %v82 = vld [vmem:[#allocation5 + $0x140] sm:$0xff]
    %v83 = vld [vmem:[#allocation5 + $0x148] sm:$0xff]
    %v84 = vld [vmem:[#allocation5 + $0x150] sm:$0xff]
    %v85 = vld [vmem:[#allocation5 + $0x158] sm:$0xff]
    %v86 = vld [vmem:[#allocation5 + $0x160] sm:$0xff]
    %v87 = vld [vmem:[#allocation5 + $0x168] sm:$0xff]
    %v88 = vld [vmem:[#allocation5 + $0x170] sm:$0xff]
    %v89 = vld [vmem:[#allocation5 + $0x178] sm:$0xff]
    %v90 = vld [vmem:[#allocation5 + $0x180] sm:$0xff]
    %v91 = vld [vmem:[#allocation5 + $0x188] sm:$0xff]
    %v92 = vld [vmem:[#allocation5 + $0x190] sm:$0xff]
    %v93 = vld [vmem:[#allocation5 + $0x198] sm:$0xff]
    %v94 = vld [vmem:[#allocation5 + $0x1a0] sm:$0xff]
    %v95 = vld [vmem:[#allocation5 + $0x1a8] sm:$0xff]
    %v96 = vld [vmem:[#allocation5 + $0x1b0] sm:$0xff]
    %v97 = vld [vmem:[#allocation5 + $0x1b8] sm:$0xff]
    %v98 = vld [vmem:[#allocation5 + $0x1c0] sm:$0xff]
    %v99 = vld [vmem:[#allocation5 + $0x1c8] sm:$0xff]
    %v100 = vld [vmem:[#allocation5 + $0x1d0] sm:$0xff]
    %v101 = vld [vmem:[#allocation5 + $0x1d8] sm:$0xff]
    %v102 = vld [vmem:[#allocation5 + $0x1e0] sm:$0xff]
    %v103 = vld [vmem:[#allocation5 + $0x1e8] sm:$0xff]
    %v104 = vld [vmem:[#allocation5 + $0x1f0] sm:$0xff]
    %v105 = vld [vmem:[#allocation5 + $0x1f8] sm:$0xff]
    %v106 = vld [vmem:[%s2] sm:$0xf]
    %v108 = vlaneseq
    %v109 = vshrl.u32 %v108, 7
    %v110 = vsub.s32 0, %v109
    %v111 = vrot.slane %v106, %v110
    %v112 = vlaneseq
    %v113 = vshrl.u32 %v112, 7
    %v114 = vsub.s32 1, %v113
    %v115 = vrot.slane %v106, %v114
    %v116 = vlaneseq
    %v117 = vshrl.u32 %v116, 7
    %v118 = vsub.s32 2, %v117
    %v119 = vrot.slane %v106, %v118
    %v120 = vlaneseq
    %v121 = vshrl.u32 %v120, 7
    %v122 = vsub.s32 3, %v121
    %v123 = vrot.slane %v106, %v122
    %128 = vmatprep.subr.mxu0 0.0
    %129 = vmatpush1.xpose.msra.mxu0 %v42
    %130 = vmatprep.subr.mxu0 0.0
    %131 = vmatpush1.xpose.msra.mxu0 %v43
    %132 = vmatprep.subr.mxu0 0.0
    %133 = vmatpush1.xpose.msra.mxu0 %v44
    %134 = vmatprep.subr.mxu0 0.0
    %135 = vmatpush1.xpose.msra.mxu0 %v45
    %136 = vmatprep.subr.mxu0 0.0
    %137 = vmatpush1.xpose.msra.mxu0 %v46
    %138 = vmatprep.subr.mxu0 0.0
    %139 = vmatpush1.xpose.msra.mxu0 %v47
    %140 = vmatprep.subr.mxu0 0.0
    %141 = vmatpush1.xpose.msra.mxu0 %v48
    %142 = vmatprep.subr.mxu0 0.0
    %143 = vmatpush1.xpose.msra.mxu0 %v49
    %144 = vmatprep.subr.mxu0 0.0
    %145 = vmatpush1.xpose.msra.mxu0 %v50
    %146 = vmatprep.subr.mxu0 0.0
    %147 = vmatpush1.xpose.msra.mxu0 %v51
    %148 = vmatprep.subr.mxu0 0.0
    %149 = vmatpush1.xpose.msra.mxu0 %v52
    %150 = vmatprep.subr.mxu0 0.0
    %151 = vmatpush1.xpose.msra.mxu0 %v53
    %152 = vmatprep.subr.mxu0 0.0
    %153 = vmatpush1.xpose.msra.mxu0 %v54
    %154 = vmatprep.subr.mxu0 0.0
    %155 = vmatpush1.xpose.msra.mxu0 %v55
    %156 = vmatprep.subr.mxu0 0.0
    %157 = vmatpush1.xpose.msra.mxu0 %v56
    %158 = vmatprep.subr.mxu0 0.0
    %159 = vmatpush1.xpose.msra.mxu0 %v57
    %160 = vmatprep.subr.mxu0 0.0
    %161 = vmatpush1.xpose.msra.mxu0 %v58
    %162 = vmatprep.subr.mxu0 0.0
    %163 = vmatpush1.xpose.msra.mxu0 %v59
    %164 = vmatprep.subr.mxu0 0.0
    %165 = vmatpush1.xpose.msra.mxu0 %v60
    %166 = vmatprep.subr.mxu0 0.0
    %167 = vmatpush1.xpose.msra.mxu0 %v61
    %168 = vmatprep.subr.mxu0 0.0
    %169 = vmatpush1.xpose.msra.mxu0 %v62
    %170 = vmatprep.subr.mxu0 0.0
    %171 = vmatpush1.xpose.msra.mxu0 %v63
    %172 = vmatprep.subr.mxu0 0.0
    %173 = vmatpush1.xpose.msra.mxu0 %v64
    %174 = vmatprep.subr.mxu0 0.0
    %175 = vmatpush1.xpose.msra.mxu0 %v65
    %176 = vmatprep.subr.mxu0 0.0
    %177 = vmatpush1.xpose.msra.mxu0 %v66
    %178 = vmatprep.subr.mxu0 0.0
    %179 = vmatpush1.xpose.msra.mxu0 %v67
    %180 = vmatprep.subr.mxu0 0.0
    %181 = vmatpush1.xpose.msra.mxu0 %v68
    %182 = vmatprep.subr.mxu0 0.0
    %183 = vmatpush1.xpose.msra.mxu0 %v69
    %184 = vmatprep.subr.mxu0 0.0
    %185 = vmatpush1.xpose.msra.mxu0 %v70
    %186 = vmatprep.subr.mxu0 0.0
    %187 = vmatpush1.xpose.msra.mxu0 %v71
    %188 = vmatprep.subr.mxu0 0.0
    %189 = vmatpush1.xpose.msra.mxu0 %v72
    %190 = vmatprep.subr.mxu0 0.0
    %191 = vmatpush1.xpose.msra.mxu0 %v73
    %192 = vmatprep.mubr.f32.mxu0 0.0
    %193 = vmatmul.mubr.f32.gmra.mrb[0].mxu0 %v41
    %v194 = vpop.f32.mrb[0].mxu0
    %v195 = vadd.f32 %v111, %v194
    %v196 = vpop.f32.mrb[0].mxu0
    %v197 = vadd.f32 %v115, %v196
    %198 = vdwg.mxu0
    %199 = vmatprep.subr.mxu0 0.0
    %200 = vmatpush1.xpose.msra.mxu0 %v74
    %201 = vmatprep.subr.mxu0 0.0
    %202 = vmatpush1.xpose.msra.mxu0 %v75
    %203 = vmatprep.subr.mxu0 0.0
    %204 = vmatpush1.xpose.msra.mxu0 %v76
    %205 = vmatprep.subr.mxu0 0.0
    %206 = vmatpush1.xpose.msra.mxu0 %v77
    %207 = vmatprep.subr.mxu0 0.0
    %208 = vmatpush1.xpose.msra.mxu0 %v78
    %209 = vmatprep.subr.mxu0 0.0
    %210 = vmatpush1.xpose.msra.mxu0 %v79
    %211 = vmatprep.subr.mxu0 0.0
    %212 = vmatpush1.xpose.msra.mxu0 %v80
    %213 = vmatprep.subr.mxu0 0.0
    %214 = vmatpush1.xpose.msra.mxu0 %v81
    %215 = vmatprep.subr.mxu0 0.0
    %216 = vmatpush1.xpose.msra.mxu0 %v82
    %217 = vmatprep.subr.mxu0 0.0
    %218 = vmatpush1.xpose.msra.mxu0 %v83
    %219 = vmatprep.subr.mxu0 0.0
    %220 = vmatpush1.xpose.msra.mxu0 %v84
    %221 = vmatprep.subr.mxu0 0.0
    %222 = vmatpush1.xpose.msra.mxu0 %v85
    %223 = vmatprep.subr.mxu0 0.0
    %224 = vmatpush1.xpose.msra.mxu0 %v86
    %225 = vmatprep.subr.mxu0 0.0
    %226 = vmatpush1.xpose.msra.mxu0 %v87
    %227 = vmatprep.subr.mxu0 0.0
    %228 = vmatpush1.xpose.msra.mxu0 %v88
    %229 = vmatprep.subr.mxu0 0.0
    %230 = vmatpush1.xpose.msra.mxu0 %v89
    %231 = vmatprep.subr.mxu0 0.0
    %232 = vmatpush1.xpose.msra.mxu0 %v90
    %233 = vmatprep.subr.mxu0 0.0
    %234 = vmatpush1.xpose.msra.mxu0 %v91
    %235 = vmatprep.subr.mxu0 0.0
    %236 = vmatpush1.xpose.msra.mxu0 %v92
    %237 = vmatprep.subr.mxu0 0.0
    %238 = vmatpush1.xpose.msra.mxu0 %v93
    %239 = vmatprep.subr.mxu0 0.0
    %240 = vmatpush1.xpose.msra.mxu0 %v94
    %241 = vmatprep.subr.mxu0 0.0
    %242 = vmatpush1.xpose.msra.mxu0 %v95
    %243 = vmatprep.subr.mxu0 0.0
    %244 = vmatpush1.xpose.msra.mxu0 %v96
    %245 = vmatprep.subr.mxu0 0.0
    %246 = vmatpush1.xpose.msra.mxu0 %v97
    %247 = vmatprep.subr.mxu0 0.0
    %248 = vmatpush1.xpose.msra.mxu0 %v98
    %249 = vmatprep.subr.mxu0 0.0
    %250 = vmatpush1.xpose.msra.mxu0 %v99
    %251 = vmatprep.subr.mxu0 0.0
    %252 = vmatpush1.xpose.msra.mxu0 %v100
    %253 = vmatprep.subr.mxu0 0.0
    %254 = vmatpush1.xpose.msra.mxu0 %v101
    %255 = vmatprep.subr.mxu0 0.0
    %256 = vmatpush1.xpose.msra.mxu0 %v102
    %257 = vmatprep.subr.mxu0 0.0
    %258 = vmatpush1.xpose.msra.mxu0 %v103
    %259 = vmatprep.subr.mxu0 0.0
    %260 = vmatpush1.xpose.msra.mxu0 %v104
    %261 = vmatprep.subr.mxu0 0.0
    %262 = vmatpush1.xpose.msra.mxu0 %v105
    %263 = vmatprep.mubr.f32.mxu0 0.0
    %264 = vmatmul.mubr.f32.gmra.mrb[0].mxu0 %v41
    %v265 = vpop.f32.mrb[0].mxu0
    %v266 = vadd.f32 %v119, %v265
    %v267 = vpop.f32.mrb[0].mxu0
    %v268 = vadd.f32 %v123, %v267
    %269 = vdwg.mxu0
    %270 = vst [vmem:[#allocation7] sm:$0xff] %v195
    %271 = vst [vmem:[#allocation7 + $0x8] sm:$0xff] %v197
    %272 = vst [vmem:[#allocation7 + $0x10] sm:$0xff] %v266
    %273 = vst [vmem:[#allocation7 + $0x18] sm:$0xff] %v268
    // Predicated region
    $region22: #{_full_vocab_logits.1} parent=1 // pred_check
      _
    $region23: #{_full_vocab_logits.1} parent=1 // pred_check_branch
      %275 = sbr.rel (0) target = $region25
    $region24: #{_full_vocab_logits.1} parent=1 // pred_region
      %s277 = ssub.s32 512, 512
      %278 = vsyncadd [#allocation4], %s277
      %s280 = sshll.u32 [#allocation7], 4
      %s281 = int_to_ptr.vmem [resolvable:$true] %s280
      %283 = dma.vmem_to_hbm [thread:$0]  %s281, 512, %s3, [#allocation4]
    $region25: #{_full_vocab_logits.1} parent=1 // pred_fallthru
      _
    // Predicated region
    $region26: #{_full_vocab_logits.1} parent=1 // pred_check
      _
    $region27: #{_full_vocab_logits.1} parent=1 // pred_check_branch
      %285 = sbr.rel (0) target = $region29
    $region28: #{_full_vocab_logits.1} parent=1 // pred_region
      %286 = dma.done [#allocation4], 512
    $region29: #{_full_vocab_logits.1} parent=1 // pred_fallthru
      _
    %287 = vsyncpa [#allocation3], 1
    %288 = vsyncpa [#allocation6], 1
    %289 = vsyncpa [#allocation4], 1

</llo_original>
